<compile_context>
chip_gen: v5e
topology: v5e:2x2
jax: 0.10.0
libtpu: 0.0.40
codegen_flags: <defaults>
</compile_context>

<pallas_src>
import functools

import jax
import jax.numpy as jnp
import numpy as np
from jax import lax
from jax.experimental import pallas as pl
from jax.experimental.pallas import tpu as pltpu


def _round_up(n, m):
    return ((n + m - 1) // m) * m


def _pad_to(a, shape):
    return jnp.pad(a, [(0, s - d) for d, s in zip(a.shape, shape)])


def _vmem_budget_bytes(arrays, extra_bytes):
    """Scoped-VMEM budget from actual padded operand sizes, capped per-generation."""
    operand = sum(int(a.size) * a.dtype.itemsize for a in arrays)
    need = int(1.5 * (operand + extra_bytes)) + (4 << 20)       # headroom + slack
    try:
        cap = int(0.75 * pltpu.get_tpu_info().vmem_capacity_bytes)
    except Exception:                                           # pragma: no cover
        cap = 48 << 20                                          # safe on v7x's 64 MiB
    return int(min(max(need, 32 << 20), cap))


def rnn_kernel(x_ref, w_ih0_ref, w_hh0_ref, w_cat_ref, b_ref, w_fc_ref, b_fc_ref,
               out_ref, gi0_ref, *, seq_len, layer_dim, time_unroll_limit, fori_unroll):
    """Single invocation: hoisted layer-0 projection + (unrolled | chunked-fori) time loop."""
    T, L = seq_len, layer_dim
    _, Bp, Dp = x_ref.shape
    Hp = w_hh0_ref.shape[-1]
    mm_dtype = w_hh0_ref.dtype        # bf16 by default (f32 fallback supported)

    # (1) Hoisted layer-0 input projection for ALL timesteps: one dense (T*Bp, Dp)@(Dp, Hp)
    #     MXU matmul off the critical recurrence path, fused layer-0 bias folded in.
    #     Parked in a VMEM scratch so the fori path can index it dynamically.
    x_all = x_ref[...].reshape(T * Bp, Dp)            # Bp is a sublane multiple -> no-op reshape
    gi0_ref[...] = (jnp.dot(x_all, w_ih0_ref[...], preferred_element_type=jnp.float32)
                    + b_ref[0]).reshape(T, Bp, Hp)

    # (2) Loop-invariant loads / broadcasts hoisted out of the time loop.
    w_hh0 = w_hh0_ref[...]                                        # (Hp, Hp)
    w_cat = [w_cat_ref[l - 1] for l in range(1, L)]               # each (2*Hp, Hp)
    b_rest = [jnp.broadcast_to(b_ref[l], (Bp, Hp)) for l in range(1, L)]

    def step(t, hs):
        # Layer 0: precomputed ih projection (+ fused bias) + hh matmul.
        gh0 = jnp.dot(hs[0].astype(mm_dtype), w_hh0, preferred_element_type=jnp.float32)
        h0_new = jnp.maximum(gi0_ref[t] + gh0, 0.0)
        h_new = [h0_new]
        inp = h0_new
        # Layers l>0: single fused [h_t^{l-1} ; h_{t-1}^l] @ [W_ih ; W_hh] matmul + bias + relu.
        # TODO(synk): for the small-batch / large-H regime, keep the fused weight resident in
        # the MXU weight registers across timesteps via pltpu.matmul_push_rhs/_acc_lhs/_pop.
        for l in range(1, L):
            cat = jnp.concatenate([inp, hs[l]], axis=-1).astype(mm_dtype)   # (Bp, 2*Hp)
            pre = (jnp.dot(cat, w_cat[l - 1], preferred_element_type=jnp.float32)
                   + b_rest[l - 1])
            inp = jnp.maximum(pre, 0.0)
            h_new.append(inp)
        return tuple(h_new)

    h0 = tuple(jnp.zeros((Bp, Hp), jnp.float32) for _ in range(L))   # PyTorch h0 = zeros

    if T <= time_unroll_limit:
        # Small T: full static unroll (no loop bookkeeping, scheduler interleaves timesteps).
        hs = h0
        for t in range(T):
            hs = step(t, hs)
    else:
        # Larger T: chunked fori_loop bounds liveness / compile time while keeping a small
        # static unroll inside the body for scheduler visibility.
        u = max(1, min(fori_unroll, T))
        n_chunks = T // u

        def chunk_body(c, hs):
            t0 = c * u
            for k in range(u):                 # static inner unroll
                hs = step(t0 + k, hs)
            return hs

        hs = lax.fori_loop(0, n_chunks, chunk_body, h0)
        for t in range(n_chunks * u, T):       # static remainder
            hs = step(t, hs)

    # Final Linear on the last timestep's top-layer hidden state.
    # Op is a multiple of 128 -> lane-dense, unmasked store.
    out_ref[...] = (jnp.dot(hs[-1].astype(mm_dtype), w_fc_ref[...],
                            preferred_element_type=jnp.float32)
                    + b_fc_ref[...]).astype(out_ref.dtype)


def rnn_model_forward(x_btd, params, *, layer_dim, matmul_dtype=jnp.bfloat16,
                      time_unroll_limit=16, fori_unroll=4):
    """x_btd: (B, T, input_dim) float32 (PyTorch batch_first convention)."""
    B, T, D = x_btd.shape
    H = params["w_hh"].shape[-1]
    O = params["w_fc"].shape[-1]
    L = layer_dim

    # TPU-native padding: batch -> sublane multiple (16 for bf16 packing, 8 for f32),
    # feature dims -> lane multiples (128). Zero padding is exact (padded units see zero
    # weights/biases, relu keeps them 0, padded batch rows never mix with real rows).
    sub = 16 if matmul_dtype == jnp.bfloat16 else 8
    Bp = _round_up(max(B, sub), sub)
    Dp = _round_up(D, 128)
    Hp = _round_up(H, 128)
    Op = _round_up(O, 128)

    # Time-major layout so per-timestep slices inside the kernel are contiguous.
    # TODO(synk): for very large T/H, stream x (and gi0) from HBM via a T-grid or
    # memory_space=pl.ANY, or compute the layer-0 projection outside the kernel, instead of
    # whole-array VMEM residency (first thing to overflow v7x's 64 MiB).
    x_tbd = jnp.transpose(x_btd, (1, 0, 2)).astype(jnp.float32)
    x_p = _pad_to(x_tbd, (T, Bp, Dp)).astype(matmul_dtype)

    w_ih0 = _pad_to(params["w_ih0"], (Dp, Hp)).astype(matmul_dtype)
    w_hh = _pad_to(params["w_hh"], (L, Hp, Hp))
    w_hh0 = w_hh[0].astype(matmul_dtype)
    if L > 1:
        w_ih_rest = _pad_to(params["w_ih_rest"][: L - 1], (L - 1, Hp, Hp))
        # Fused per-layer weight [W_ih^l ; W_hh^l] -> one (2*Hp, Hp) MXU op per l>0 step.
        w_cat = jnp.concatenate([w_ih_rest, w_hh[1:]], axis=1).astype(matmul_dtype)
    else:
        w_cat = jnp.zeros((1, 2 * Hp, Hp), matmul_dtype)   # dummy slot, never read
    # Pre-fold the two RNN biases (b_ih + b_hh): one broadcast add per layer/timestep
    # (layer 0's is folded into the hoisted projection inside the kernel).
    b_fused = _pad_to(params["b_ih"] + params["b_hh"], (L, 1, Hp)).astype(jnp.float32)
    w_fc = _pad_to(params["w_fc"], (Hp, Op)).astype(matmul_dtype)
    b_fc = _pad_to(params["b_fc"], (1, Op)).astype(jnp.float32)
    # TODO(synk): int8 (v5e/v6e) / fp8 (v7x) weight quantization when VMEM weight bandwidth
    # becomes the per-timestep floor at large H.

    operands = (x_p, w_ih0, w_hh0, w_cat, b_fused, w_fc, b_fc)
    gi0_bytes = T * Bp * Hp * 4
    vmem_limit = _vmem_budget_bytes(operands, gi0_bytes + Bp * Op * 4)

    kernel = functools.partial(rnn_kernel, seq_len=T, layer_dim=L,
                               time_unroll_limit=time_unroll_limit,
                               fori_unroll=fori_unroll)
    vmem_spec = pl.BlockSpec(memory_space=pltpu.MemorySpace.VMEM)

    # TODO(synk): on v7x (2 TensorCores) and non-trivial batch, add a leading 'parallel'
    # grid axis over batch halves (or pl.core_map) so both cores run the recurrence.
    out_p = pl.pallas_call(
        kernel,
        out_shape=jax.ShapeDtypeStruct((Bp, Op), jnp.float32),
        in_specs=[vmem_spec] * len(operands),   # small operands whole-array resident, no grid
        out_specs=vmem_spec,
        scratch_shapes=[pltpu.VMEM((T, Bp, Hp), jnp.float32)],   # hoisted layer-0 projection
        compiler_params=pltpu.CompilerParams(vmem_limit_bytes=vmem_limit),
    )(*operands)

    return out_p[:B, :O]


def init_params(key, input_dim, hidden_dim, layer_dim, output_dim):
    """Deterministic init; mirrors PyTorch's U(-1/sqrt(H), 1/sqrt(H)). Stored transposed."""
    ks = jax.random.split(key, 8)
    s = 1.0 / np.sqrt(hidden_dim)
    Lr = max(layer_dim - 1, 1)
    u = lambda k, shp: jax.random.uniform(k, shp, jnp.float32, -s, s)
    return {
        "w_ih0": u(ks[0], (input_dim, hidden_dim)),              # (D, H)
        "w_ih_rest": u(ks[1], (Lr, hidden_dim, hidden_dim)),     # (L-1, H, H)
        "w_hh": u(ks[2], (layer_dim, hidden_dim, hidden_dim)),   # (L, H, H)
        "b_ih": u(ks[3], (layer_dim, 1, hidden_dim)),            # (L, 1, H)
        "b_hh": u(ks[4], (layer_dim, 1, hidden_dim)),            # (L, 1, H)
        "w_fc": u(ks[5], (hidden_dim, output_dim)),              # (H, O)
        "b_fc": u(ks[6], (1, output_dim)),                       # (1, O)
    }


def reference_forward(x_btd, params, *, layer_dim, matmul_dtype=jnp.float32):
    """Pure-JAX reference of the module forward. `matmul_dtype=bf16` mirrors the kernel's
    MXU input precision (f32 accumulation) for a precision-matched check."""
    B, T, D = x_btd.shape
    H = params["w_hh"].shape[-1]
    dot = lambda a, b: jnp.dot(a.astype(matmul_dtype), b.astype(matmul_dtype),
                               preferred_element_type=jnp.float32)
    h = [jnp.zeros((B, H), jnp.float32) for _ in range(layer_dim)]
    last = None
    for t in range(T):
        inp = x_btd[:, t, :]
        for l in range(layer_dim):
            w_ih = params["w_ih0"] if l == 0 else params["w_ih_rest"][l - 1]
            hn = jnp.maximum(dot(inp, w_ih) + params["b_ih"][l]
                             + dot(h[l], params["w_hh"][l]) + params["b_hh"][l], 0.0)
            h[l] = hn
            inp = hn
        last = inp
    return dot(last, params["w_fc"]) + params["b_fc"]


if __name__ == "__main__":
    # Small shapes consistent with the module's forward: (batch, seq, input_dim).
    B, T, INPUT_DIM, HIDDEN_DIM, LAYER_DIM, OUTPUT_DIM = 2, 8, 8, 32, 2, 4

    key = jax.random.PRNGKey(0)
    kx, kp, kx2 = jax.random.split(key, 3)
    x = jax.random.normal(kx, (B, T, INPUT_DIM), jnp.float32)
    params = init_params(kp, INPUT_DIM, HIDDEN_DIM, LAYER_DIM, OUTPUT_DIM)

    # Path 1: small T -> fully unrolled in-kernel time loop (bf16 MXU operands).
    out = jax.block_until_ready(rnn_model_forward(x, params, layer_dim=LAYER_DIM))
    ref_mm = reference_forward(x, params, layer_dim=LAYER_DIM, matmul_dtype=jnp.bfloat16)
    np.testing.assert_allclose(np.asarray(out), np.asarray(ref_mm), rtol=5e-3, atol=5e-3)
    # Loose sanity check against the exact f32 module semantics (bf16 MXU inputs only).
    ref_f32 = reference_forward(x, params, layer_dim=LAYER_DIM)
    np.testing.assert_allclose(np.asarray(out), np.asarray(ref_f32), rtol=1e-1, atol=1e-1)

    # Path 2: larger T -> in-kernel chunked fori_loop (bounded liveness), same semantics.
    T2 = 32
    x2 = jax.random.normal(kx2, (B, T2, INPUT_DIM), jnp.float32)
    out2 = jax.block_until_ready(rnn_model_forward(x2, params, layer_dim=LAYER_DIM))
    ref2 = reference_forward(x2, params, layer_dim=LAYER_DIM, matmul_dtype=jnp.bfloat16)
    np.testing.assert_allclose(np.asarray(out2), np.asarray(ref2), rtol=1e-2, atol=1e-2)

    print("KERNEL_OK")
</pallas_src>

<mosaic_0001>
module attributes {stable_mosaic.version = 11 : i64} {
  func.func @rnn_kernel(%arg0: memref<8x16x128xbf16, #tpu.memory_space<vmem>>, %arg1: memref<128x128xbf16, #tpu.memory_space<vmem>>, %arg2: memref<128x128xbf16, #tpu.memory_space<vmem>>, %arg3: memref<1x256x128xbf16, #tpu.memory_space<vmem>>, %arg4: memref<2x1x128xf32, #tpu.memory_space<vmem>>, %arg5: memref<128x128xbf16, #tpu.memory_space<vmem>>, %arg6: memref<1x128xf32, #tpu.memory_space<vmem>>, %arg7: memref<16x128xf32, #tpu.memory_space<vmem>>, %arg8: memref<8x16x128xf32, #tpu.memory_space<vmem>>) attributes {dimension_semantics = [], scalar_prefetch = 0 : i64, scratch_operands = 1 : i64, tpu.core_type = #tpu.core_type<tc>} {
    %c0 = arith.constant 0 : index
    %c0_0 = arith.constant 0 : index
    %c0_1 = arith.constant 0 : index
    %0 = vector.load %arg0[%c0, %c0_0, %c0_1] : memref<8x16x128xbf16, #tpu.memory_space<vmem>>, vector<8x16x128xbf16>
    %1 = vector.shape_cast %0 : vector<8x16x128xbf16> to vector<128x128xbf16>
    %c0_2 = arith.constant 0 : index
    %c0_3 = arith.constant 0 : index
    %2 = vector.load %arg1[%c0_2, %c0_3] : memref<128x128xbf16, #tpu.memory_space<vmem>>, vector<128x128xbf16>
    %cst = arith.constant dense<0.000000e+00> : vector<128x128xf32>
    %3 = tpu.matmul %1, %2, %cst {dimension_numbers = #tpu.dot_dimension_numbers<[1], [0], [0], [1], [0, 0, 1, 1], [], []>} : vector<128x128xbf16>, vector<128x128xbf16>, vector<128x128xf32> -> vector<128x128xf32>
    %c0_4 = arith.constant 0 : index
    %c0_5 = arith.constant 0 : index
    %c0_6 = arith.constant 0 : index
    %4 = vector.load %arg4[%c0_4, %c0_5, %c0_6] : memref<2x1x128xf32, #tpu.memory_space<vmem>>, vector<1x1x128xf32>
    %5 = vector.shape_cast %4 : vector<1x1x128xf32> to vector<1x128xf32>
    %6 = vector.broadcast %5 : vector<1x128xf32> to vector<128x128xf32>
    %7 = arith.addf %3, %6 : vector<128x128xf32>
    %8 = vector.shape_cast %7 : vector<128x128xf32> to vector<8x16x128xf32>
    %c0_7 = arith.constant 0 : index
    %c0_8 = arith.constant 0 : index
    %c0_9 = arith.constant 0 : index
    %9 = vector.load %arg8[%c0_7, %c0_8, %c0_9] : memref<8x16x128xf32, #tpu.memory_space<vmem>>, vector<8x16x128xf32>
    tpu.vector_store %arg8[%c0_7, %c0_8, %c0_9], %8 {strides = array<i32>} : memref<8x16x128xf32, #tpu.memory_space<vmem>>, vector<8x16x128xf32>,
    %c0_10 = arith.constant 0 : index
    %c0_11 = arith.constant 0 : index
    %10 = vector.load %arg2[%c0_10, %c0_11] : memref<128x128xbf16, #tpu.memory_space<vmem>>, vector<128x128xbf16>
    %c0_12 = arith.constant 0 : index
    %c0_13 = arith.constant 0 : index
    %c0_14 = arith.constant 0 : index
    %11 = vector.load %arg3[%c0_12, %c0_13, %c0_14] : memref<1x256x128xbf16, #tpu.memory_space<vmem>>, vector<1x256x128xbf16>
    %12 = vector.shape_cast %11 : vector<1x256x128xbf16> to vector<256x128xbf16>
    %c1 = arith.constant 1 : index
    %c0_15 = arith.constant 0 : index
    %c0_16 = arith.constant 0 : index
    %13 = vector.load %arg4[%c1, %c0_15, %c0_16] : memref<2x1x128xf32, #tpu.memory_space<vmem>>, vector<1x1x128xf32>
    %14 = vector.shape_cast %13 : vector<1x1x128xf32> to vector<1x128xf32>
    %15 = vector.shape_cast %14 : vector<1x128xf32> to vector<1x128xf32>
    %16 = vector.broadcast %15 : vector<1x128xf32> to vector<16x128xf32>
    %cst_17 = arith.constant 0.000000e+00 : f32
    %17 = vector.broadcast %cst_17 : f32 to vector<16x128xf32>
    %cst_18 = arith.constant 0.000000e+00 : f32
    %18 = vector.broadcast %cst_18 : f32 to vector<16x128xf32>
    %19 = arith.truncf %17 : vector<16x128xf32> to vector<16x128xbf16>
    %cst_19 = arith.constant dense<0.000000e+00> : vector<16x128xf32>
    %20 = tpu.matmul %19, %10, %cst_19 {dimension_numbers = #tpu.dot_dimension_numbers<[1], [0], [0], [1], [0, 0, 1, 1], [], []>} : vector<16x128xbf16>, vector<128x128xbf16>, vector<16x128xf32> -> vector<16x128xf32>
    %c0_20 = arith.constant 0 : index
    %c0_21 = arith.constant 0 : index
    %c0_22 = arith.constant 0 : index
    %21 = vector.load %arg8[%c0_20, %c0_21, %c0_22] : memref<8x16x128xf32, #tpu.memory_space<vmem>>, vector<1x16x128xf32>
    %22 = vector.shape_cast %21 : vector<1x16x128xf32> to vector<16x128xf32>
    %23 = arith.addf %22, %20 : vector<16x128xf32>
    %cst_23 = arith.constant 0.000000e+00 : f32
    %24 = vector.broadcast %cst_23 : f32 to vector<16x128xf32>
    %25 = arith.maximumf %23, %24 : vector<16x128xf32>
    %26 = tpu.concatenate %25, %18 in 1 : vector<16x128xf32>, vector<16x128xf32> -> vector<16x256xf32>
    %27 = arith.truncf %26 : vector<16x256xf32> to vector<16x256xbf16>
    %cst_24 = arith.constant dense<0.000000e+00> : vector<16x128xf32>
    %28 = tpu.matmul %27, %12, %cst_24 {dimension_numbers = #tpu.dot_dimension_numbers<[1], [0], [0], [1], [0, 0, 1, 1], [], []>} : vector<16x256xbf16>, vector<256x128xbf16>, vector<16x128xf32> -> vector<16x128xf32>
    %29 = arith.addf %28, %16 : vector<16x128xf32>
    %cst_25 = arith.constant 0.000000e+00 : f32
    %30 = vector.broadcast %cst_25 : f32 to vector<16x128xf32>
    %31 = arith.maximumf %29, %30 : vector<16x128xf32>
    %32 = arith.truncf %25 : vector<16x128xf32> to vector<16x128xbf16>
    %cst_26 = arith.constant dense<0.000000e+00> : vector<16x128xf32>
    %33 = tpu.matmul %32, %10, %cst_26 {dimension_numbers = #tpu.dot_dimension_numbers<[1], [0], [0], [1], [0, 0, 1, 1], [], []>} : vector<16x128xbf16>, vector<128x128xbf16>, vector<16x128xf32> -> vector<16x128xf32>
    %c1_27 = arith.constant 1 : index
    %c0_28 = arith.constant 0 : index
    %c0_29 = arith.constant 0 : index
    %34 = vector.load %arg8[%c1_27, %c0_28, %c0_29] : memref<8x16x128xf32, #tpu.memory_space<vmem>>, vector<1x16x128xf32>
    %35 = vector.shape_cast %34 : vector<1x16x128xf32> to vector<16x128xf32>
    %36 = arith.addf %35, %33 : vector<16x128xf32>
    %cst_30 = arith.constant 0.000000e+00 : f32
    %37 = vector.broadcast %cst_30 : f32 to vector<16x128xf32>
    %38 = arith.maximumf %36, %37 : vector<16x128xf32>
    %39 = tpu.concatenate %38, %31 in 1 : vector<16x128xf32>, vector<16x128xf32> -> vector<16x256xf32>
    %40 = arith.truncf %39 : vector<16x256xf32> to vector<16x256xbf16>
    %cst_31 = arith.constant dense<0.000000e+00> : vector<16x128xf32>
    %41 = tpu.matmul %40, %12, %cst_31 {dimension_numbers = #tpu.dot_dimension_numbers<[1], [0], [0], [1], [0, 0, 1, 1], [], []>} : vector<16x256xbf16>, vector<256x128xbf16>, vector<16x128xf32> -> vector<16x128xf32>
    %42 = arith.addf %41, %16 : vector<16x128xf32>
    %cst_32 = arith.constant 0.000000e+00 : f32
    %43 = vector.broadcast %cst_32 : f32 to vector<16x128xf32>
    %44 = arith.maximumf %42, %43 : vector<16x128xf32>
    %45 = arith.truncf %38 : vector<16x128xf32> to vector<16x128xbf16>
    %cst_33 = arith.constant dense<0.000000e+00> : vector<16x128xf32>
    %46 = tpu.matmul %45, %10, %cst_33 {dimension_numbers = #tpu.dot_dimension_numbers<[1], [0], [0], [1], [0, 0, 1, 1], [], []>} : vector<16x128xbf16>, vector<128x128xbf16>, vector<16x128xf32> -> vector<16x128xf32>
    %c2 = arith.constant 2 : index
    %c0_34 = arith.constant 0 : index
    %c0_35 = arith.constant 0 : index
    %47 = vector.load %arg8[%c2, %c0_34, %c0_35] : memref<8x16x128xf32, #tpu.memory_space<vmem>>, vector<1x16x128xf32>
    %48 = vector.shape_cast %47 : vector<1x16x128xf32> to vector<16x128xf32>
    %49 = arith.addf %48, %46 : vector<16x128xf32>
    %cst_36 = arith.constant 0.000000e+00 : f32
    %50 = vector.broadcast %cst_36 : f32 to vector<16x128xf32>
    %51 = arith.maximumf %49, %50 : vector<16x128xf32>
    %52 = tpu.concatenate %51, %44 in 1 : vector<16x128xf32>, vector<16x128xf32> -> vector<16x256xf32>
    %53 = arith.truncf %52 : vector<16x256xf32> to vector<16x256xbf16>
    %cst_37 = arith.constant dense<0.000000e+00> : vector<16x128xf32>
    %54 = tpu.matmul %53, %12, %cst_37 {dimension_numbers = #tpu.dot_dimension_numbers<[1], [0], [0], [1], [0, 0, 1, 1], [], []>} : vector<16x256xbf16>, vector<256x128xbf16>, vector<16x128xf32> -> vector<16x128xf32>
    %55 = arith.addf %54, %16 : vector<16x128xf32>
    %cst_38 = arith.constant 0.000000e+00 : f32
    %56 = vector.broadcast %cst_38 : f32 to vector<16x128xf32>
    %57 = arith.maximumf %55, %56 : vector<16x128xf32>
    %58 = arith.truncf %51 : vector<16x128xf32> to vector<16x128xbf16>
    %cst_39 = arith.constant dense<0.000000e+00> : vector<16x128xf32>
    %59 = tpu.matmul %58, %10, %cst_39 {dimension_numbers = #tpu.dot_dimension_numbers<[1], [0], [0], [1], [0, 0, 1, 1], [], []>} : vector<16x128xbf16>, vector<128x128xbf16>, vector<16x128xf32> -> vector<16x128xf32>
    %c3 = arith.constant 3 : index
    %c0_40 = arith.constant 0 : index
    %c0_41 = arith.constant 0 : index
    %60 = vector.load %arg8[%c3, %c0_40, %c0_41] : memref<8x16x128xf32, #tpu.memory_space<vmem>>, vector<1x16x128xf32>
    %61 = vector.shape_cast %60 : vector<1x16x128xf32> to vector<16x128xf32>
    %62 = arith.addf %61, %59 : vector<16x128xf32>
    %cst_42 = arith.constant 0.000000e+00 : f32
    %63 = vector.broadcast %cst_42 : f32 to vector<16x128xf32>
    %64 = arith.maximumf %62, %63 : vector<16x128xf32>
    %65 = tpu.concatenate %64, %57 in 1 : vector<16x128xf32>, vector<16x128xf32> -> vector<16x256xf32>
    %66 = arith.truncf %65 : vector<16x256xf32> to vector<16x256xbf16>
    %cst_43 = arith.constant dense<0.000000e+00> : vector<16x128xf32>
    %67 = tpu.matmul %66, %12, %cst_43 {dimension_numbers = #tpu.dot_dimension_numbers<[1], [0], [0], [1], [0, 0, 1, 1], [], []>} : vector<16x256xbf16>, vector<256x128xbf16>, vector<16x128xf32> -> vector<16x128xf32>
    %68 = arith.addf %67, %16 : vector<16x128xf32>
    %cst_44 = arith.constant 0.000000e+00 : f32
    %69 = vector.broadcast %cst_44 : f32 to vector<16x128xf32>
    %70 = arith.maximumf %68, %69 : vector<16x128xf32>
    %71 = arith.truncf %64 : vector<16x128xf32> to vector<16x128xbf16>
    %cst_45 = arith.constant dense<0.000000e+00> : vector<16x128xf32>
    %72 = tpu.matmul %71, %10, %cst_45 {dimension_numbers = #tpu.dot_dimension_numbers<[1], [0], [0], [1], [0, 0, 1, 1], [], []>} : vector<16x128xbf16>, vector<128x128xbf16>, vector<16x128xf32> -> vector<16x128xf32>
    %c4 = arith.constant 4 : index
    %c0_46 = arith.constant 0 : index
    %c0_47 = arith.constant 0 : index
    %73 = vector.load %arg8[%c4, %c0_46, %c0_47] : memref<8x16x128xf32, #tpu.memory_space<vmem>>, vector<1x16x128xf32>
    %74 = vector.shape_cast %73 : vector<1x16x128xf32> to vector<16x128xf32>
    %75 = arith.addf %74, %72 : vector<16x128xf32>
    %cst_48 = arith.constant 0.000000e+00 : f32
    %76 = vector.broadcast %cst_48 : f32 to vector<16x128xf32>
    %77 = arith.maximumf %75, %76 : vector<16x128xf32>
    %78 = tpu.concatenate %77, %70 in 1 : vector<16x128xf32>, vector<16x128xf32> -> vector<16x256xf32>
    %79 = arith.truncf %78 : vector<16x256xf32> to vector<16x256xbf16>
    %cst_49 = arith.constant dense<0.000000e+00> : vector<16x128xf32>
    %80 = tpu.matmul %79, %12, %cst_49 {dimension_numbers = #tpu.dot_dimension_numbers<[1], [0], [0], [1], [0, 0, 1, 1], [], []>} : vector<16x256xbf16>, vector<256x128xbf16>, vector<16x128xf32> -> vector<16x128xf32>
    %81 = arith.addf %80, %16 : vector<16x128xf32>
    %cst_50 = arith.constant 0.000000e+00 : f32
    %82 = vector.broadcast %cst_50 : f32 to vector<16x128xf32>
    %83 = arith.maximumf %81, %82 : vector<16x128xf32>
    %84 = arith.truncf %77 : vector<16x128xf32> to vector<16x128xbf16>
    %cst_51 = arith.constant dense<0.000000e+00> : vector<16x128xf32>
    %85 = tpu.matmul %84, %10, %cst_51 {dimension_numbers = #tpu.dot_dimension_numbers<[1], [0], [0], [1], [0, 0, 1, 1], [], []>} : vector<16x128xbf16>, vector<128x128xbf16>, vector<16x128xf32> -> vector<16x128xf32>
    %c5 = arith.constant 5 : index
    %c0_52 = arith.constant 0 : index
    %c0_53 = arith.constant 0 : index
    %86 = vector.load %arg8[%c5, %c0_52, %c0_53] : memref<8x16x128xf32, #tpu.memory_space<vmem>>, vector<1x16x128xf32>
    %87 = vector.shape_cast %86 : vector<1x16x128xf32> to vector<16x128xf32>
    %88 = arith.addf %87, %85 : vector<16x128xf32>
    %cst_54 = arith.constant 0.000000e+00 : f32
    %89 = vector.broadcast %cst_54 : f32 to vector<16x128xf32>
    %90 = arith.maximumf %88, %89 : vector<16x128xf32>
    %91 = tpu.concatenate %90, %83 in 1 : vector<16x128xf32>, vector<16x128xf32> -> vector<16x256xf32>
    %92 = arith.truncf %91 : vector<16x256xf32> to vector<16x256xbf16>
    %cst_55 = arith.constant dense<0.000000e+00> : vector<16x128xf32>
    %93 = tpu.matmul %92, %12, %cst_55 {dimension_numbers = #tpu.dot_dimension_numbers<[1], [0], [0], [1], [0, 0, 1, 1], [], []>} : vector<16x256xbf16>, vector<256x128xbf16>, vector<16x128xf32> -> vector<16x128xf32>
    %94 = arith.addf %93, %16 : vector<16x128xf32>
    %cst_56 = arith.constant 0.000000e+00 : f32
    %95 = vector.broadcast %cst_56 : f32 to vector<16x128xf32>
    %96 = arith.maximumf %94, %95 : vector<16x128xf32>
    %97 = arith.truncf %90 : vector<16x128xf32> to vector<16x128xbf16>
    %cst_57 = arith.constant dense<0.000000e+00> : vector<16x128xf32>
    %98 = tpu.matmul %97, %10, %cst_57 {dimension_numbers = #tpu.dot_dimension_numbers<[1], [0], [0], [1], [0, 0, 1, 1], [], []>} : vector<16x128xbf16>, vector<128x128xbf16>, vector<16x128xf32> -> vector<16x128xf32>
    %c6 = arith.constant 6 : index
    %c0_58 = arith.constant 0 : index
    %c0_59 = arith.constant 0 : index
    %99 = vector.load %arg8[%c6, %c0_58, %c0_59] : memref<8x16x128xf32, #tpu.memory_space<vmem>>, vector<1x16x128xf32>
    %100 = vector.shape_cast %99 : vector<1x16x128xf32> to vector<16x128xf32>
    %101 = arith.addf %100, %98 : vector<16x128xf32>
    %cst_60 = arith.constant 0.000000e+00 : f32
    %102 = vector.broadcast %cst_60 : f32 to vector<16x128xf32>
    %103 = arith.maximumf %101, %102 : vector<16x128xf32>
    %104 = tpu.concatenate %103, %96 in 1 : vector<16x128xf32>, vector<16x128xf32> -> vector<16x256xf32>
    %105 = arith.truncf %104 : vector<16x256xf32> to vector<16x256xbf16>
    %cst_61 = arith.constant dense<0.000000e+00> : vector<16x128xf32>
    %106 = tpu.matmul %105, %12, %cst_61 {dimension_numbers = #tpu.dot_dimension_numbers<[1], [0], [0], [1], [0, 0, 1, 1], [], []>} : vector<16x256xbf16>, vector<256x128xbf16>, vector<16x128xf32> -> vector<16x128xf32>
    %107 = arith.addf %106, %16 : vector<16x128xf32>
    %cst_62 = arith.constant 0.000000e+00 : f32
    %108 = vector.broadcast %cst_62 : f32 to vector<16x128xf32>
    %109 = arith.maximumf %107, %108 : vector<16x128xf32>
    %110 = arith.truncf %103 : vector<16x128xf32> to vector<16x128xbf16>
    %cst_63 = arith.constant dense<0.000000e+00> : vector<16x128xf32>
    %111 = tpu.matmul %110, %10, %cst_63 {dimension_numbers = #tpu.dot_dimension_numbers<[1], [0], [0], [1], [0, 0, 1, 1], [], []>} : vector<16x128xbf16>, vector<128x128xbf16>, vector<16x128xf32> -> vector<16x128xf32>
    %c7 = arith.constant 7 : index
    %c0_64 = arith.constant 0 : index
    %c0_65 = arith.constant 0 : index
    %112 = vector.load %arg8[%c7, %c0_64, %c0_65] : memref<8x16x128xf32, #tpu.memory_space<vmem>>, vector<1x16x128xf32>
    %113 = vector.shape_cast %112 : vector<1x16x128xf32> to vector<16x128xf32>
    %114 = arith.addf %113, %111 : vector<16x128xf32>
    %cst_66 = arith.constant 0.000000e+00 : f32
    %115 = vector.broadcast %cst_66 : f32 to vector<16x128xf32>
    %116 = arith.maximumf %114, %115 : vector<16x128xf32>
    %117 = tpu.concatenate %116, %109 in 1 : vector<16x128xf32>, vector<16x128xf32> -> vector<16x256xf32>
    %118 = arith.truncf %117 : vector<16x256xf32> to vector<16x256xbf16>
    %cst_67 = arith.constant dense<0.000000e+00> : vector<16x128xf32>
    %119 = tpu.matmul %118, %12, %cst_67 {dimension_numbers = #tpu.dot_dimension_numbers<[1], [0], [0], [1], [0, 0, 1, 1], [], []>} : vector<16x256xbf16>, vector<256x128xbf16>, vector<16x128xf32> -> vector<16x128xf32>
    %120 = arith.addf %119, %16 : vector<16x128xf32>
    %cst_68 = arith.constant 0.000000e+00 : f32
    %121 = vector.broadcast %cst_68 : f32 to vector<16x128xf32>
    %122 = arith.maximumf %120, %121 : vector<16x128xf32>
    %123 = arith.truncf %122 : vector<16x128xf32> to vector<16x128xbf16>
    %c0_69 = arith.constant 0 : index
    %c0_70 = arith.constant 0 : index
    %124 = vector.load %arg5[%c0_69, %c0_70] : memref<128x128xbf16, #tpu.memory_space<vmem>>, vector<128x128xbf16>
    %cst_71 = arith.constant dense<0.000000e+00> : vector<16x128xf32>
    %125 = tpu.matmul %123, %124, %cst_71 {dimension_numbers = #tpu.dot_dimension_numbers<[1], [0], [0], [1], [0, 0, 1, 1], [], []>} : vector<16x128xbf16>, vector<128x128xbf16>, vector<16x128xf32> -> vector<16x128xf32>
    %c0_72 = arith.constant 0 : index
    %c0_73 = arith.constant 0 : index
    %126 = vector.load %arg6[%c0_72, %c0_73] : memref<1x128xf32, #tpu.memory_space<vmem>>, vector<1x128xf32>
    %127 = vector.broadcast %126 : vector<1x128xf32> to vector<16x128xf32>
    %128 = arith.addf %125, %127 : vector<16x128xf32>
    %c0_74 = arith.constant 0 : index
    %c0_75 = arith.constant 0 : index
    %129 = vector.load %arg7[%c0_74, %c0_75] : memref<16x128xf32, #tpu.memory_space<vmem>>, vector<16x128xf32>
    tpu.vector_store %arg7[%c0_74, %c0_75], %128 {strides = array<i32>} : memref<16x128xf32, #tpu.memory_space<vmem>>, vector<16x128xf32>,
    return
  }
}

</mosaic_0001>

<llo_original>
// kernel: tpu_custom_call.1
$region0: #{tpu_custom_call.1}
  #allocation0 [shape = 'u32[]', space=smem, size = 0x4, offset = 0x4, fixed_abs, tag = 'smem constant byte address 0x4 - core index']
  #allocation1 [shape = 'u32[72,128]{1,0:T(1,128)}', space=vmem, size = 0x9000, scoped, tag = 'internal scratch']
  #allocation2 [shape = 'f32[8,16,128]{2,1,0:T(8,128)}', space=vmem, size = 0x10000, scoped, tag = 'scratch operand']
  %s0 = inlined_call_operand.hbm [shape: bf16[8,16,128], index: 0, kind: input, shape index: {}]
  %s1 = inlined_call_operand.hbm [shape: bf16[128,128], index: 1, kind: input, shape index: {}]
  %s2 = inlined_call_operand.hbm [shape: bf16[128,128], index: 2, kind: input, shape index: {}]
  %s3 = inlined_call_operand.hbm [shape: bf16[1,256,128], index: 3, kind: input, shape index: {}]
  %s4 = inlined_call_operand.vmem [shape: f32[2,1,128], index: 4, kind: input, shape index: {}]
  %s5 = inlined_call_operand.hbm [shape: bf16[128,128], index: 5, kind: input, shape index: {}]
  %s6 = inlined_call_operand.vmem [shape: f32[1,128], index: 6, kind: input, shape index: {}]
  %s7 = inlined_call_operand.hbm [shape: f32[16,128], index: 7, kind: output, shape index: {}]
  %s8 = sld [smem:[#allocation0]]
  $region58: #{tpu_custom_call.1} parent=0
    _
  %s10 = ssub.s32 1, %s8
  %s11 = scalar_select 0, %s10, %s8
  $region1: #{tpu_custom_call.1} parent=0
    #allocation3 [shape = 'u8[32768]{0}', space=vmem, size = 0x8000, scoped, tag = 'input window, operand 0, single buffered']
    #allocation4 [shape = 's32[1]{0}', space=sflag, size = 0x4, scoped, tag = 'scoped memory for tpu_custom_call.1']
    #allocation5 [shape = 's32[1]{0}', space=sflag, size = 0x4, scoped, tag = 'scoped memory for tpu_custom_call.1']
    #allocation6 [shape = 'u8[32768]{0}', space=vmem, size = 0x8000, scoped, tag = 'input window, operand 1, single buffered']
    #allocation7 [shape = 's32[1]{0}', space=sflag, size = 0x4, scoped, tag = 'scoped memory for tpu_custom_call.1']
    #allocation8 [shape = 'u8[32768]{0}', space=vmem, size = 0x8000, scoped, tag = 'input window, operand 2, single buffered']
    #allocation9 [shape = 'u8[65536]{0}', space=vmem, size = 0x10000, scoped, tag = 'input window, operand 3, single buffered']
    #allocation10 [shape = 's32[1]{0}', space=sflag, size = 0x4, scoped, tag = 'scoped memory for tpu_custom_call.1']
    #allocation11 [shape = 'u8[32768]{0}', space=vmem, size = 0x8000, scoped, tag = 'input window, operand 5, single buffered']
    #allocation12 [shape = 'u8[8192]{0}', space=vmem, size = 0x2000, scoped, tag = 'output window, operand 0, single buffered']
    %12 = vsyncpa [#allocation4], 0
    %13 = vsyncpa [#allocation7], 0
    %14 = vsyncpa [#allocation10], 0
    %15 = vsyncpa [#allocation5], 0
    // Predicated region
    $region2: #{tpu_custom_call.1} parent=1 // pred_check
      _
    $region3: #{tpu_custom_call.1} parent=1 // pred_check_branch
      %17 = sbr.rel (0) target = $region5
    $region4: #{tpu_custom_call.1} parent=1 // pred_region
      %19 = vsyncadd [#allocation4], 0
      %s20 = sshll.u32 %s0, 4
      %s21 = int_to_ptr.hbm [resolvable:$true] %s20
      %s22 = sshll.u32 [#allocation3], 4
      %s23 = int_to_ptr.vmem [resolvable:$true] %s22
      %28 = dma.hbm_to_vmem [thread:$0]  %s21, 1024, %s23, [#allocation4], 64, 64, 4
    $region5: #{tpu_custom_call.1} parent=1 // pred_fallthru
      _
    // Predicated region
    $region6: #{tpu_custom_call.1} parent=1 // pred_check
      _
    $region7: #{tpu_custom_call.1} parent=1 // pred_check_branch
      %30 = sbr.rel (0) target = $region9
    $region8: #{tpu_custom_call.1} parent=1 // pred_region
      %32 = vsyncadd [#allocation7], 0
      %s33 = sshll.u32 %s1, 4
      %s34 = int_to_ptr.hbm [resolvable:$true] %s33
      %s35 = sshll.u32 [#allocation6], 4
      %s36 = int_to_ptr.vmem [resolvable:$true] %s35
      %41 = dma.hbm_to_vmem [thread:$0]  %s34, 1024, %s36, [#allocation7], 64, 64, 4
    $region9: #{tpu_custom_call.1} parent=1 // pred_fallthru
      _
    // Predicated region
    $region10: #{tpu_custom_call.1} parent=1 // pred_check
      _
    $region11: #{tpu_custom_call.1} parent=1 // pred_check_branch
      %43 = sbr.rel (0) target = $region13
    $region12: #{tpu_custom_call.1} parent=1 // pred_region
      %45 = vsyncadd [#allocation7], 0
      %s46 = sshll.u32 %s2, 4
      %s47 = int_to_ptr.hbm [resolvable:$true] %s46
      %s48 = sshll.u32 [#allocation8], 4
      %s49 = int_to_ptr.vmem [resolvable:$true] %s48
      %54 = dma.hbm_to_vmem [thread:$0]  %s47, 1024, %s49, [#allocation7], 64, 64, 4
    $region13: #{tpu_custom_call.1} parent=1 // pred_fallthru
      _
    // Predicated region
    $region14: #{tpu_custom_call.1} parent=1 // pred_check
      _
    $region15: #{tpu_custom_call.1} parent=1 // pred_check_branch
      %56 = sbr.rel (0) target = $region17
    $region16: #{tpu_custom_call.1} parent=1 // pred_region
      %58 = vsyncadd [#allocation10], 0
      %s59 = sshll.u32 %s3, 4
      %s60 = int_to_ptr.hbm [resolvable:$true] %s59
      %s61 = sshll.u32 [#allocation9], 4
      %s62 = int_to_ptr.vmem [resolvable:$true] %s61
      %67 = dma.hbm_to_vmem [thread:$0]  %s60, 2048, %s62, [#allocation10], 64, 64, 4
    $region17: #{tpu_custom_call.1} parent=1 // pred_fallthru
      _
    // Predicated region
    $region18: #{tpu_custom_call.1} parent=1 // pred_check
      _
    $region19: #{tpu_custom_call.1} parent=1 // pred_check_branch
      %69 = sbr.rel (0) target = $region21
    $region20: #{tpu_custom_call.1} parent=1 // pred_region
      _
    $region21: #{tpu_custom_call.1} parent=1 // pred_fallthru
      _
    // Predicated region
    $region22: #{tpu_custom_call.1} parent=1 // pred_check
      _
    $region23: #{tpu_custom_call.1} parent=1 // pred_check_branch
      %71 = sbr.rel (0) target = $region25
    $region24: #{tpu_custom_call.1} parent=1 // pred_region
      %73 = vsyncadd [#allocation10], 0
      %s74 = sshll.u32 %s5, 4
      %s75 = int_to_ptr.hbm [resolvable:$true] %s74
      %s76 = sshll.u32 [#allocation11], 4
      %s77 = int_to_ptr.vmem [resolvable:$true] %s76
      %82 = dma.hbm_to_vmem [thread:$0]  %s75, 1024, %s77, [#allocation10], 64, 64, 4
    $region25: #{tpu_custom_call.1} parent=1 // pred_fallthru
      _
    // Predicated region
    $region26: #{tpu_custom_call.1} parent=1 // pred_check
      _
    $region27: #{tpu_custom_call.1} parent=1 // pred_check_branch
      %84 = sbr.rel (0) target = $region29
    $region28: #{tpu_custom_call.1} parent=1 // pred_region
      _
    $region29: #{tpu_custom_call.1} parent=1 // pred_fallthru
      _
    // Predicated region
    $region30: #{tpu_custom_call.1} parent=1 // pred_check
      _
    $region31: #{tpu_custom_call.1} parent=1 // pred_check_branch
      %86 = sbr.rel (0) target = $region33
    $region32: #{tpu_custom_call.1} parent=1 // pred_region
      %88 = dma.done [#allocation4], 1024
    $region33: #{tpu_custom_call.1} parent=1 // pred_fallthru
      _
    // Predicated region
    $region34: #{tpu_custom_call.1} parent=1 // pred_check
      _
    $region35: #{tpu_custom_call.1} parent=1 // pred_check_branch
      %90 = sbr.rel (0) target = $region37
    $region36: #{tpu_custom_call.1} parent=1 // pred_region
      %92 = dma.done [#allocation7], 1024
    $region37: #{tpu_custom_call.1} parent=1 // pred_fallthru
      _
    // Predicated region
    $region38: #{tpu_custom_call.1} parent=1 // pred_check
      _
    $region39: #{tpu_custom_call.1} parent=1 // pred_check_branch
      %94 = sbr.rel (0) target = $region41
    $region40: #{tpu_custom_call.1} parent=1 // pred_region
      %96 = dma.done [#allocation7], 1024
    $region41: #{tpu_custom_call.1} parent=1 // pred_fallthru
      _
    // Predicated region
    $region42: #{tpu_custom_call.1} parent=1 // pred_check
      _
    $region43: #{tpu_custom_call.1} parent=1 // pred_check_branch
      %98 = sbr.rel (0) target = $region45
    $region44: #{tpu_custom_call.1} parent=1 // pred_region
      %100 = dma.done [#allocation10], 2048
    $region45: #{tpu_custom_call.1} parent=1 // pred_fallthru
      _
    // Predicated region
    $region46: #{tpu_custom_call.1} parent=1 // pred_check
      _
    $region47: #{tpu_custom_call.1} parent=1 // pred_check_branch
      %102 = sbr.rel (0) target = $region49
    $region48: #{tpu_custom_call.1} parent=1 // pred_region
      %104 = dma.done [#allocation10], 1024
    $region49: #{tpu_custom_call.1} parent=1 // pred_fallthru
      _
    %v106 = vld [vmem:[#allocation3] sm:$0xf]
    %v107 = vld [vmem:[#allocation3 + $0x4] sm:$0xf]
    %v108 = vld [vmem:[#allocation3 + $0x8] sm:$0xf]
    %v109 = vld [vmem:[#allocation3 + $0xc] sm:$0xf]
    %v110 = vld [vmem:[#allocation3 + $0x10] sm:$0xf]
    %v111 = vld [vmem:[#allocation3 + $0x14] sm:$0xf]
    %v112 = vld [vmem:[#allocation3 + $0x18] sm:$0xf]
    %v113 = vld [vmem:[#allocation3 + $0x1c] sm:$0xf]
    %v114 = vld [vmem:[#allocation3 + $0x20] sm:$0xf]
    %v115 = vld [vmem:[#allocation3 + $0x24] sm:$0xf]
    %v116 = vld [vmem:[#allocation3 + $0x28] sm:$0xf]
    %v117 = vld [vmem:[#allocation3 + $0x2c] sm:$0xf]
    %v118 = vld [vmem:[#allocation3 + $0x30] sm:$0xf]
    %v119 = vld [vmem:[#allocation3 + $0x34] sm:$0xf]
    %v120 = vld [vmem:[#allocation3 + $0x38] sm:$0xf]
    %v121 = vld [vmem:[#allocation3 + $0x3c] sm:$0xf]
    %v122 = vld [vmem:[#allocation6] sm:$0xf]
    %v123 = vld [vmem:[#allocation6 + $0x4] sm:$0xf]
    %v124 = vld [vmem:[#allocation6 + $0x8] sm:$0xf]
    %v125 = vld [vmem:[#allocation6 + $0xc] sm:$0xf]
    %v126 = vld [vmem:[#allocation6 + $0x10] sm:$0xf]
    %v127 = vld [vmem:[#allocation6 + $0x14] sm:$0xf]
    %v128 = vld [vmem:[#allocation6 + $0x18] sm:$0xf]
    %v129 = vld [vmem:[#allocation6 + $0x1c] sm:$0xf]
    %v130 = vld [vmem:[#allocation6 + $0x20] sm:$0xf]
    %v131 = vld [vmem:[#allocation6 + $0x24] sm:$0xf]
    %v132 = vld [vmem:[#allocation6 + $0x28] sm:$0xf]
    %v133 = vld [vmem:[#allocation6 + $0x2c] sm:$0xf]
    %v134 = vld [vmem:[#allocation6 + $0x30] sm:$0xf]
    %v135 = vld [vmem:[#allocation6 + $0x34] sm:$0xf]
    %v136 = vld [vmem:[#allocation6 + $0x38] sm:$0xf]
    %v137 = vld [vmem:[#allocation6 + $0x3c] sm:$0xf]
    %v138 = vld [vmem:[%s4] sm:$0x1]
    %v140 = vperm.slane %v138, 0
    %v158 = vunpack.c.l.b16 %v106
    %v159 = vunpack.c.l.b16 %v107
    %v160 = vunpack.c.l.b16 %v108
    %v161 = vunpack.c.l.b16 %v109
    %v162 = vunpack.c.l.b16 %v110
    %v163 = vunpack.c.l.b16 %v111
    %v164 = vunpack.c.l.b16 %v112
    %v165 = vunpack.c.l.b16 %v113
    %v166 = vunpack.c.l.b16 %v114
    %v167 = vunpack.c.l.b16 %v115
    %v168 = vunpack.c.l.b16 %v116
    %v169 = vunpack.c.l.b16 %v117
    %v170 = vunpack.c.l.b16 %v118
    %v171 = vunpack.c.l.b16 %v119
    %v172 = vunpack.c.l.b16 %v120
    %v173 = vunpack.c.l.b16 %v121
    %v174 = vpack.c.b16 %v159, %v158
    %v175 = vpack.c.b16 %v161, %v160
    %v176 = vpack.c.b16 %v163, %v162
    %v177 = vpack.c.b16 %v165, %v164
    %v178 = vpack.c.b16 %v167, %v166
    %v179 = vpack.c.b16 %v169, %v168
    %v180 = vpack.c.b16 %v171, %v170
    %v181 = vpack.c.b16 %v173, %v172
    %v206 = vunpack.c.l.b16 %v122
    %v207 = vunpack.c.l.b16 %v123
    %v208 = vunpack.c.l.b16 %v124
    %v209 = vunpack.c.l.b16 %v125
    %v210 = vunpack.c.l.b16 %v126
    %v211 = vunpack.c.l.b16 %v127
    %v212 = vunpack.c.l.b16 %v128
    %v213 = vunpack.c.l.b16 %v129
    %v214 = vunpack.c.l.b16 %v130
    %v215 = vunpack.c.l.b16 %v131
    %v216 = vunpack.c.l.b16 %v132
    %v217 = vunpack.c.l.b16 %v133
    %v218 = vunpack.c.l.b16 %v134
    %v219 = vunpack.c.l.b16 %v135
    %v220 = vunpack.c.l.b16 %v136
    %v221 = vunpack.c.l.b16 %v137
    %v222 = vpack.c.b16 %v207, %v206
    %v223 = vpack.c.b16 %v209, %v208
    %v224 = vpack.c.b16 %v211, %v210
    %v225 = vpack.c.b16 %v213, %v212
    %v226 = vpack.c.b16 %v215, %v214
    %v227 = vpack.c.b16 %v217, %v216
    %v228 = vpack.c.b16 %v219, %v218
    %v229 = vpack.c.b16 %v221, %v220
    %238 = vmatpush.bf16.msra.mxu0 %v229
    %239 = vmatpush.bf16.msra.mxu0 %v228
    %240 = vmatpush.bf16.msra.mxu0 %v227
    %241 = vmatpush.bf16.msra.mxu0 %v226
    %242 = vmatpush.bf16.msra.mxu0 %v225
    %243 = vmatpush.bf16.msra.mxu0 %v224
    %244 = vmatpush.bf16.msra.mxu0 %v223
    %245 = vmatpush.bf16.msra.mxu0 %v222
    %246 = vmatmul.bf16.gmra.mxu0 %v174
    %v247 = vpop.f32.mrf.mxu0
    %v248 = vadd.f32 %v140, %v247
    %v249 = vpop.f32.mrf.mxu0
    %v250 = vadd.f32 %v140, %v249
    %251 = vmatmul.bf16.gmra.mxu0 %v175
    %v252 = vpop.f32.mrf.mxu0
    %v253 = vadd.f32 %v140, %v252
    %v254 = vpop.f32.mrf.mxu0
    %v255 = vadd.f32 %v140, %v254
    %256 = vmatmul.bf16.gmra.mxu0 %v176
    %v257 = vpop.f32.mrf.mxu0
    %v258 = vadd.f32 %v140, %v257
    %v259 = vpop.f32.mrf.mxu0
    %v260 = vadd.f32 %v140, %v259
    %261 = vmatmul.bf16.gmra.mxu0 %v177
    %v262 = vpop.f32.mrf.mxu0
    %v263 = vadd.f32 %v140, %v262
    %v264 = vpop.f32.mrf.mxu0
    %v265 = vadd.f32 %v140, %v264
    %266 = vmatmul.bf16.gmra.mxu0 %v178
    %v267 = vpop.f32.mrf.mxu0
    %v268 = vadd.f32 %v140, %v267
    %v269 = vpop.f32.mrf.mxu0
    %v270 = vadd.f32 %v140, %v269
    %271 = vmatmul.bf16.gmra.mxu0 %v179
    %v272 = vpop.f32.mrf.mxu0
    %v273 = vadd.f32 %v140, %v272
    %v274 = vpop.f32.mrf.mxu0
    %v275 = vadd.f32 %v140, %v274
    %276 = vmatmul.bf16.gmra.mxu0 %v180
    %v277 = vpop.f32.mrf.mxu0
    %v278 = vadd.f32 %v140, %v277
    %v279 = vpop.f32.mrf.mxu0
    %v280 = vadd.f32 %v140, %v279
    %281 = vmatmul.bf16.gmra.mxu0 %v181
    %v282 = vpop.f32.mrf.mxu0
    %v283 = vadd.f32 %v140, %v282
    %v284 = vpop.f32.mrf.mxu0
    %v285 = vadd.f32 %v140, %v284
    %286 = vdwg.mxu0
    %287 = vst [vmem:[#allocation2] sm:$0xff] %v248
    %288 = vst [vmem:[#allocation2 + $0x8] sm:$0xff] %v250
    %289 = vst [vmem:[#allocation2 + $0x10] sm:$0xff] %v253
    %290 = vst [vmem:[#allocation2 + $0x18] sm:$0xff] %v255
    %291 = vst [vmem:[#allocation2 + $0x20] sm:$0xff] %v258
    %292 = vst [vmem:[#allocation2 + $0x28] sm:$0xff] %v260
    %293 = vst [vmem:[#allocation2 + $0x30] sm:$0xff] %v263
    %294 = vst [vmem:[#allocation2 + $0x38] sm:$0xff] %v265
    %295 = vst [vmem:[#allocation2 + $0x40] sm:$0xff] %v268
    %296 = vst [vmem:[#allocation2 + $0x48] sm:$0xff] %v270
    %297 = vst [vmem:[#allocation2 + $0x50] sm:$0xff] %v273
    %298 = vst [vmem:[#allocation2 + $0x58] sm:$0xff] %v275
    %299 = vst [vmem:[#allocation2 + $0x60] sm:$0xff] %v278
    %300 = vst [vmem:[#allocation2 + $0x68] sm:$0xff] %v280
    %301 = vst [vmem:[#allocation2 + $0x70] sm:$0xff] %v283
    %302 = vst [vmem:[#allocation2 + $0x78] sm:$0xff] %v285
    %v303 = vld [vmem:[#allocation8] sm:$0xf]
    %v304 = vld [vmem:[#allocation8 + $0x4] sm:$0xf]
    %v305 = vld [vmem:[#allocation8 + $0x8] sm:$0xf]
    %v306 = vld [vmem:[#allocation8 + $0xc] sm:$0xf]
    %v307 = vld [vmem:[#allocation8 + $0x10] sm:$0xf]
    %v308 = vld [vmem:[#allocation8 + $0x14] sm:$0xf]
    %v309 = vld [vmem:[#allocation8 + $0x18] sm:$0xf]
    %v310 = vld [vmem:[#allocation8 + $0x1c] sm:$0xf]
    %v311 = vld [vmem:[#allocation8 + $0x20] sm:$0xf]
    %v312 = vld [vmem:[#allocation8 + $0x24] sm:$0xf]
    %v313 = vld [vmem:[#allocation8 + $0x28] sm:$0xf]
    %v314 = vld [vmem:[#allocation8 + $0x2c] sm:$0xf]
    %v315 = vld [vmem:[#allocation8 + $0x30] sm:$0xf]
    %v316 = vld [vmem:[#allocation8 + $0x34] sm:$0xf]
    %v317 = vld [vmem:[#allocation8 + $0x38] sm:$0xf]
    %v318 = vld [vmem:[#allocation8 + $0x3c] sm:$0xf]
    %v319 = vld [vmem:[#allocation9] sm:$0xf]
    %v320 = vld [vmem:[#allocation9 + $0x4] sm:$0xf]
    %v321 = vld [vmem:[#allocation9 + $0x8] sm:$0xf]
    %v322 = vld [vmem:[#allocation9 + $0xc] sm:$0xf]
    %v323 = vld [vmem:[#allocation9 + $0x10] sm:$0xf]
    %v324 = vld [vmem:[#allocation9 + $0x14] sm:$0xf]
    %v325 = vld [vmem:[#allocation9 + $0x18] sm:$0xf]
    %v326 = vld [vmem:[#allocation9 + $0x1c] sm:$0xf]
    %v327 = vld [vmem:[#allocation9 + $0x20] sm:$0xf]
    %v328 = vld [vmem:[#allocation9 + $0x24] sm:$0xf]
    %v329 = vld [vmem:[#allocation9 + $0x28] sm:$0xf]
    %v330 = vld [vmem:[#allocation9 + $0x2c] sm:$0xf]
    %v331 = vld [vmem:[#allocation9 + $0x30] sm:$0xf]
    %v332 = vld [vmem:[#allocation9 + $0x34] sm:$0xf]
    %v333 = vld [vmem:[#allocation9 + $0x38] sm:$0xf]
    %v334 = vld [vmem:[#allocation9 + $0x3c] sm:$0xf]
    %v335 = vld [vmem:[#allocation9 + $0x40] sm:$0xf]
    %v336 = vld [vmem:[#allocation9 + $0x44] sm:$0xf]
    %v337 = vld [vmem:[#allocation9 + $0x48] sm:$0xf]
    %v338 = vld [vmem:[#allocation9 + $0x4c] sm:$0xf]
    %v339 = vld [vmem:[#allocation9 + $0x50] sm:$0xf]
    %v340 = vld [vmem:[#allocation9 + $0x54] sm:$0xf]
    %v341 = vld [vmem:[#allocation9 + $0x58] sm:$0xf]
    %v342 = vld [vmem:[#allocation9 + $0x5c] sm:$0xf]
    %v343 = vld [vmem:[#allocation9 + $0x60] sm:$0xf]
    %v344 = vld [vmem:[#allocation9 + $0x64] sm:$0xf]
    %v345 = vld [vmem:[#allocation9 + $0x68] sm:$0xf]
    %v346 = vld [vmem:[#allocation9 + $0x6c] sm:$0xf]
    %v347 = vld [vmem:[#allocation9 + $0x70] sm:$0xf]
    %v348 = vld [vmem:[#allocation9 + $0x74] sm:$0xf]
    %v349 = vld [vmem:[#allocation9 + $0x78] sm:$0xf]
    %v350 = vld [vmem:[#allocation9 + $0x7c] sm:$0xf]
    %s351 = scalar_lea.vmem %s4, 1
    %v352 = vld [vmem:[%s351] sm:$0x1]
    %v354 = vperm.slane %v352, 0
    %v372 = vunpack.c.l.b16 %v303
    %v373 = vunpack.c.l.b16 %v304
    %v374 = vunpack.c.l.b16 %v305
    %v375 = vunpack.c.l.b16 %v306
    %v376 = vunpack.c.l.b16 %v307
    %v377 = vunpack.c.l.b16 %v308
    %v378 = vunpack.c.l.b16 %v309
    %v379 = vunpack.c.l.b16 %v310
    %v380 = vunpack.c.l.b16 %v311
    %v381 = vunpack.c.l.b16 %v312
    %v382 = vunpack.c.l.b16 %v313
    %v383 = vunpack.c.l.b16 %v314
    %v384 = vunpack.c.l.b16 %v315
    %v385 = vunpack.c.l.b16 %v316
    %v386 = vunpack.c.l.b16 %v317
    %v387 = vunpack.c.l.b16 %v318
    %v388 = vpack.c.b16 %v373, %v372
    %v389 = vpack.c.b16 %v375, %v374
    %v390 = vpack.c.b16 %v377, %v376
    %v391 = vpack.c.b16 %v379, %v378
    %v392 = vpack.c.b16 %v381, %v380
    %v393 = vpack.c.b16 %v383, %v382
    %v394 = vpack.c.b16 %v385, %v384
    %v395 = vpack.c.b16 %v387, %v386
    %404 = vmatpush.bf16.msra.mxu0 %v395
    %405 = vmatpush.bf16.msra.mxu0 %v394
    %406 = vmatpush.bf16.msra.mxu0 %v393
    %407 = vmatpush.bf16.msra.mxu0 %v392
    %408 = vmatpush.bf16.msra.mxu0 %v391
    %409 = vmatpush.bf16.msra.mxu0 %v390
    %410 = vmatpush.bf16.msra.mxu0 %v389
    %411 = vmatpush.bf16.msra.mxu0 %v388
    %412 = vmatmul.bf16.gmra.mxu0 0
    %v413 = vpop.f32.mrf.mxu0
    %v414 = vadd.f32 0.0, %v413
    %v415 = vpop.f32.mrf.mxu0
    %v416 = vadd.f32 0.0, %v415
    %417 = vdwg.mxu0
    %v418 = vld [vmem:[#allocation2] sm:$0xff]
    %v419 = vld [vmem:[#allocation2 + $0x8] sm:$0xff]
    %v420 = vadd.f32 %v418, %v414
    %v421 = vadd.f32 %v419, %v416
    %v422 = vmax.f32 %v420, 0.0
    %v423 = vmax.f32 %v421, 0.0
    %v424 = vpack.c.bf16 %v423, %v422
    %v425 = vpack.c.bf16 0.0, 0.0
    %v458 = vunpack.c.l.b16 %v319
    %v459 = vunpack.c.l.b16 %v320
    %v460 = vunpack.c.l.b16 %v321
    %v461 = vunpack.c.l.b16 %v322
    %v462 = vunpack.c.l.b16 %v323
    %v463 = vunpack.c.l.b16 %v324
    %v464 = vunpack.c.l.b16 %v325
    %v465 = vunpack.c.l.b16 %v326
    %v466 = vunpack.c.l.b16 %v327
    %v467 = vunpack.c.l.b16 %v328
    %v468 = vunpack.c.l.b16 %v329
    %v469 = vunpack.c.l.b16 %v330
    %v470 = vunpack.c.l.b16 %v331
    %v471 = vunpack.c.l.b16 %v332
    %v472 = vunpack.c.l.b16 %v333
    %v473 = vunpack.c.l.b16 %v334
    %v474 = vunpack.c.l.b16 %v335
    %v475 = vunpack.c.l.b16 %v336
    %v476 = vunpack.c.l.b16 %v337
    %v477 = vunpack.c.l.b16 %v338
    %v478 = vunpack.c.l.b16 %v339
    %v479 = vunpack.c.l.b16 %v340
    %v480 = vunpack.c.l.b16 %v341
    %v481 = vunpack.c.l.b16 %v342
    %v482 = vunpack.c.l.b16 %v343
    %v483 = vunpack.c.l.b16 %v344
    %v484 = vunpack.c.l.b16 %v345
    %v485 = vunpack.c.l.b16 %v346
    %v486 = vunpack.c.l.b16 %v347
    %v487 = vunpack.c.l.b16 %v348
    %v488 = vunpack.c.l.b16 %v349
    %v489 = vunpack.c.l.b16 %v350
    %v490 = vpack.c.b16 %v459, %v458
    %v491 = vpack.c.b16 %v461, %v460
    %v492 = vpack.c.b16 %v463, %v462
    %v493 = vpack.c.b16 %v465, %v464
    %v494 = vpack.c.b16 %v467, %v466
    %v495 = vpack.c.b16 %v469, %v468
    %v496 = vpack.c.b16 %v471, %v470
    %v497 = vpack.c.b16 %v473, %v472
    %v498 = vpack.c.b16 %v475, %v474
    %v499 = vpack.c.b16 %v477, %v476
    %v500 = vpack.c.b16 %v479, %v478
    %v501 = vpack.c.b16 %v481, %v480
    %v502 = vpack.c.b16 %v483, %v482
    %v503 = vpack.c.b16 %v485, %v484
    %v504 = vpack.c.b16 %v487, %v486
    %v505 = vpack.c.b16 %v489, %v488
    %522 = vmatpush.bf16.msra.mxu0 %v497
    %523 = vmatpush.bf16.msra.mxu0 %v496
    %524 = vmatpush.bf16.msra.mxu0 %v495
    %525 = vmatpush.bf16.msra.mxu0 %v494
    %526 = vmatpush.bf16.msra.mxu0 %v493
    %527 = vmatpush.bf16.msra.mxu0 %v492
    %528 = vmatpush.bf16.msra.mxu0 %v491
    %529 = vmatpush.bf16.msra.mxu0 %v490
    %530 = vmatmul.bf16.gmra.mxu0 %v424
    %v531 = vpop.f32.mrf.mxu0
    %v532 = vadd.f32 %v354, %v531
    %v533 = vpop.f32.mrf.mxu0
    %v534 = vadd.f32 %v354, %v533
    %535 = vdwg.mxu0
    %536 = vmatpush.bf16.msra.mxu0 %v505
    %537 = vmatpush.bf16.msra.mxu0 %v504
    %538 = vmatpush.bf16.msra.mxu0 %v503
    %539 = vmatpush.bf16.msra.mxu0 %v502
    %540 = vmatpush.bf16.msra.mxu0 %v501
    %541 = vmatpush.bf16.msra.mxu0 %v500
    %542 = vmatpush.bf16.msra.mxu0 %v499
    %543 = vmatpush.bf16.msra.mxu0 %v498
    %544 = vmatmul.bf16.gmra.mxu0 %v425
    %v545 = vpop.f32.mrf.mxu0
    %v546 = vadd.f32 %v532, %v545
    %v547 = vpop.f32.mrf.mxu0
    %v548 = vadd.f32 %v534, %v547
    %549 = vdwg.mxu0
    %v550 = vmax.f32 %v546, 0.0
    %v551 = vmax.f32 %v548, 0.0
    %552 = vmatpush.bf16.msra.mxu0 %v395
    %553 = vmatpush.bf16.msra.mxu0 %v394
    %554 = vmatpush.bf16.msra.mxu0 %v393
    %555 = vmatpush.bf16.msra.mxu0 %v392
    %556 = vmatpush.bf16.msra.mxu0 %v391
    %557 = vmatpush.bf16.msra.mxu0 %v390
    %558 = vmatpush.bf16.msra.mxu0 %v389
    %559 = vmatpush.bf16.msra.mxu0 %v388
    %560 = vmatmul.bf16.gmra.mxu0 %v424
    %v561 = vpop.f32.mrf.mxu0
    %v562 = vadd.f32 0.0, %v561
    %v563 = vpop.f32.mrf.mxu0
    %v564 = vadd.f32 0.0, %v563
    %565 = vdwg.mxu0
    %s566 = scalar_lea.vmem [#allocation2], 16
    %v567 = vld [vmem:[%s566] sm:$0xff]
    %v568 = vld [vmem:[%s566 + $0x8] sm:$0xff]
    %v569 = vadd.f32 %v567, %v562
    %v570 = vadd.f32 %v568, %v564
    %v571 = vmax.f32 %v569, 0.0
    %v572 = vmax.f32 %v570, 0.0
    %v573 = vpack.c.bf16 %v572, %v571
    %v574 = vpack.c.bf16 %v551, %v550
    %575 = vmatpush.bf16.msra.mxu0 %v497
    %576 = vmatpush.bf16.msra.mxu0 %v496
    %577 = vmatpush.bf16.msra.mxu0 %v495
    %578 = vmatpush.bf16.msra.mxu0 %v494
    %579 = vmatpush.bf16.msra.mxu0 %v493
    %580 = vmatpush.bf16.msra.mxu0 %v492
    %581 = vmatpush.bf16.msra.mxu0 %v491
    %582 = vmatpush.bf16.msra.mxu0 %v490
    %583 = vmatmul.bf16.gmra.mxu0 %v573
    %v584 = vpop.f32.mrf.mxu0
    %v585 = vadd.f32 %v354, %v584
    %v586 = vpop.f32.mrf.mxu0
    %v587 = vadd.f32 %v354, %v586
    %588 = vdwg.mxu0
    %589 = vmatpush.bf16.msra.mxu0 %v505
    %590 = vmatpush.bf16.msra.mxu0 %v504
    %591 = vmatpush.bf16.msra.mxu0 %v503
    %592 = vmatpush.bf16.msra.mxu0 %v502
    %593 = vmatpush.bf16.msra.mxu0 %v501
    %594 = vmatpush.bf16.msra.mxu0 %v500
    %595 = vmatpush.bf16.msra.mxu0 %v499
    %596 = vmatpush.bf16.msra.mxu0 %v498
    %597 = vmatmul.bf16.gmra.mxu0 %v574
    %v598 = vpop.f32.mrf.mxu0
    %v599 = vadd.f32 %v585, %v598
    %v600 = vpop.f32.mrf.mxu0
    %v601 = vadd.f32 %v587, %v600
    %602 = vdwg.mxu0
    %v603 = vmax.f32 %v599, 0.0
    %v604 = vmax.f32 %v601, 0.0
    %605 = vmatpush.bf16.msra.mxu0 %v395
    %606 = vmatpush.bf16.msra.mxu0 %v394
    %607 = vmatpush.bf16.msra.mxu0 %v393
    %608 = vmatpush.bf16.msra.mxu0 %v392
    %609 = vmatpush.bf16.msra.mxu0 %v391
    %610 = vmatpush.bf16.msra.mxu0 %v390
    %611 = vmatpush.bf16.msra.mxu0 %v389
    %612 = vmatpush.bf16.msra.mxu0 %v388
    %613 = vmatmul.bf16.gmra.mxu0 %v573
    %v614 = vpop.f32.mrf.mxu0
    %v615 = vadd.f32 0.0, %v614
    %v616 = vpop.f32.mrf.mxu0
    %v617 = vadd.f32 0.0, %v616
    %618 = vdwg.mxu0
    %s619 = scalar_lea.vmem [#allocation2], 32
    %v620 = vld [vmem:[%s619] sm:$0xff]
    %v621 = vld [vmem:[%s619 + $0x8] sm:$0xff]
    %v622 = vadd.f32 %v620, %v615
    %v623 = vadd.f32 %v621, %v617
    %v624 = vmax.f32 %v622, 0.0
    %v625 = vmax.f32 %v623, 0.0
    %v626 = vpack.c.bf16 %v625, %v624
    %v627 = vpack.c.bf16 %v604, %v603
    %628 = vmatpush.bf16.msra.mxu0 %v497
    %629 = vmatpush.bf16.msra.mxu0 %v496
    %630 = vmatpush.bf16.msra.mxu0 %v495
    %631 = vmatpush.bf16.msra.mxu0 %v494
    %632 = vmatpush.bf16.msra.mxu0 %v493
    %633 = vmatpush.bf16.msra.mxu0 %v492
    %634 = vmatpush.bf16.msra.mxu0 %v491
    %635 = vmatpush.bf16.msra.mxu0 %v490
    %636 = vmatmul.bf16.gmra.mxu0 %v626
    %v637 = vpop.f32.mrf.mxu0
    %v638 = vadd.f32 %v354, %v637
    %v639 = vpop.f32.mrf.mxu0
    %v640 = vadd.f32 %v354, %v639
    %641 = vdwg.mxu0
    %642 = vmatpush.bf16.msra.mxu0 %v505
    %643 = vmatpush.bf16.msra.mxu0 %v504
    %644 = vmatpush.bf16.msra.mxu0 %v503
    %645 = vmatpush.bf16.msra.mxu0 %v502
    %646 = vmatpush.bf16.msra.mxu0 %v501
    %647 = vmatpush.bf16.msra.mxu0 %v500
    %648 = vmatpush.bf16.msra.mxu0 %v499
    %649 = vmatpush.bf16.msra.mxu0 %v498
    %650 = vmatmul.bf16.gmra.mxu0 %v627
    %v651 = vpop.f32.mrf.mxu0
    %v652 = vadd.f32 %v638, %v651
    %v653 = vpop.f32.mrf.mxu0
    %v654 = vadd.f32 %v640, %v653
    %655 = vdwg.mxu0
    %v656 = vmax.f32 %v652, 0.0
    %v657 = vmax.f32 %v654, 0.0
    %658 = vmatpush.bf16.msra.mxu0 %v395
    %659 = vmatpush.bf16.msra.mxu0 %v394
    %660 = vmatpush.bf16.msra.mxu0 %v393
    %661 = vmatpush.bf16.msra.mxu0 %v392
    %662 = vmatpush.bf16.msra.mxu0 %v391
    %663 = vmatpush.bf16.msra.mxu0 %v390
    %664 = vmatpush.bf16.msra.mxu0 %v389
    %665 = vmatpush.bf16.msra.mxu0 %v388
    %666 = vmatmul.bf16.gmra.mxu0 %v626
    %v667 = vpop.f32.mrf.mxu0
    %v668 = vadd.f32 0.0, %v667
    %v669 = vpop.f32.mrf.mxu0
    %v670 = vadd.f32 0.0, %v669
    %671 = vdwg.mxu0
    %s672 = scalar_lea.vmem [#allocation2], 48
    %v673 = vld [vmem:[%s672] sm:$0xff]
    %v674 = vld [vmem:[%s672 + $0x8] sm:$0xff]
    %v675 = vadd.f32 %v673, %v668
    %v676 = vadd.f32 %v674, %v670
    %v677 = vmax.f32 %v675, 0.0
    %v678 = vmax.f32 %v676, 0.0
    %v679 = vpack.c.bf16 %v678, %v677
    %v680 = vpack.c.bf16 %v657, %v656
    %681 = vmatpush.bf16.msra.mxu0 %v497
    %682 = vmatpush.bf16.msra.mxu0 %v496
    %683 = vmatpush.bf16.msra.mxu0 %v495
    %684 = vmatpush.bf16.msra.mxu0 %v494
    %685 = vmatpush.bf16.msra.mxu0 %v493
    %686 = vmatpush.bf16.msra.mxu0 %v492
    %687 = vmatpush.bf16.msra.mxu0 %v491
    %688 = vmatpush.bf16.msra.mxu0 %v490
    %689 = vmatmul.bf16.gmra.mxu0 %v679
    %v690 = vpop.f32.mrf.mxu0
    %v691 = vadd.f32 %v354, %v690
    %v692 = vpop.f32.mrf.mxu0
    %v693 = vadd.f32 %v354, %v692
    %694 = vdwg.mxu0
    %695 = vmatpush.bf16.msra.mxu0 %v505
    %696 = vmatpush.bf16.msra.mxu0 %v504
    %697 = vmatpush.bf16.msra.mxu0 %v503
    %698 = vmatpush.bf16.msra.mxu0 %v502
    %699 = vmatpush.bf16.msra.mxu0 %v501
    %700 = vmatpush.bf16.msra.mxu0 %v500
    %701 = vmatpush.bf16.msra.mxu0 %v499
    %702 = vmatpush.bf16.msra.mxu0 %v498
    %703 = vmatmul.bf16.gmra.mxu0 %v680
    %v704 = vpop.f32.mrf.mxu0
    %v705 = vadd.f32 %v691, %v704
    %v706 = vpop.f32.mrf.mxu0
    %v707 = vadd.f32 %v693, %v706
    %708 = vdwg.mxu0
    %v709 = vmax.f32 %v705, 0.0
    %v710 = vmax.f32 %v707, 0.0
    %711 = vmatpush.bf16.msra.mxu0 %v395
    %712 = vmatpush.bf16.msra.mxu0 %v394
    %713 = vmatpush.bf16.msra.mxu0 %v393
    %714 = vmatpush.bf16.msra.mxu0 %v392
    %715 = vmatpush.bf16.msra.mxu0 %v391
    %716 = vmatpush.bf16.msra.mxu0 %v390
    %717 = vmatpush.bf16.msra.mxu0 %v389
    %718 = vmatpush.bf16.msra.mxu0 %v388
    %719 = vmatmul.bf16.gmra.mxu0 %v679
    %v720 = vpop.f32.mrf.mxu0
    %v721 = vadd.f32 0.0, %v720
    %v722 = vpop.f32.mrf.mxu0
    %v723 = vadd.f32 0.0, %v722
    %724 = vdwg.mxu0
    %s725 = scalar_lea.vmem [#allocation2], 64
    %v726 = vld [vmem:[%s725] sm:$0xff]
    %v727 = vld [vmem:[%s725 + $0x8] sm:$0xff]
    %v728 = vadd.f32 %v726, %v721
    %v729 = vadd.f32 %v727, %v723
    %v730 = vmax.f32 %v728, 0.0
    %v731 = vmax.f32 %v729, 0.0
    %v732 = vpack.c.bf16 %v731, %v730
    %v733 = vpack.c.bf16 %v710, %v709
    %734 = vmatpush.bf16.msra.mxu0 %v497
    %735 = vmatpush.bf16.msra.mxu0 %v496
    %736 = vmatpush.bf16.msra.mxu0 %v495
    %737 = vmatpush.bf16.msra.mxu0 %v494
    %738 = vmatpush.bf16.msra.mxu0 %v493
    %739 = vmatpush.bf16.msra.mxu0 %v492
    %740 = vmatpush.bf16.msra.mxu0 %v491
    %741 = vmatpush.bf16.msra.mxu0 %v490
    %742 = vmatmul.bf16.gmra.mxu0 %v732
    %v743 = vpop.f32.mrf.mxu0
    %v744 = vadd.f32 %v354, %v743
    %v745 = vpop.f32.mrf.mxu0
    %v746 = vadd.f32 %v354, %v745
    %747 = vdwg.mxu0
    %748 = vmatpush.bf16.msra.mxu0 %v505
    %749 = vmatpush.bf16.msra.mxu0 %v504
    %750 = vmatpush.bf16.msra.mxu0 %v503
    %751 = vmatpush.bf16.msra.mxu0 %v502
    %752 = vmatpush.bf16.msra.mxu0 %v501
    %753 = vmatpush.bf16.msra.mxu0 %v500
    %754 = vmatpush.bf16.msra.mxu0 %v499
    %755 = vmatpush.bf16.msra.mxu0 %v498
    %756 = vmatmul.bf16.gmra.mxu0 %v733
    %v757 = vpop.f32.mrf.mxu0
    %v758 = vadd.f32 %v744, %v757
    %v759 = vpop.f32.mrf.mxu0
    %v760 = vadd.f32 %v746, %v759
    %761 = vdwg.mxu0
    %v762 = vmax.f32 %v758, 0.0
    %v763 = vmax.f32 %v760, 0.0
    %764 = vmatpush.bf16.msra.mxu0 %v395
    %765 = vmatpush.bf16.msra.mxu0 %v394
    %766 = vmatpush.bf16.msra.mxu0 %v393
    %767 = vmatpush.bf16.msra.mxu0 %v392
    %768 = vmatpush.bf16.msra.mxu0 %v391
    %769 = vmatpush.bf16.msra.mxu0 %v390
    %770 = vmatpush.bf16.msra.mxu0 %v389
    %771 = vmatpush.bf16.msra.mxu0 %v388
    %772 = vmatmul.bf16.gmra.mxu0 %v732
    %v773 = vpop.f32.mrf.mxu0
    %v774 = vadd.f32 0.0, %v773
    %v775 = vpop.f32.mrf.mxu0
    %v776 = vadd.f32 0.0, %v775
    %777 = vdwg.mxu0
    %s778 = scalar_lea.vmem [#allocation2], 80
    %v779 = vld [vmem:[%s778] sm:$0xff]
    %v780 = vld [vmem:[%s778 + $0x8] sm:$0xff]
    %v781 = vadd.f32 %v779, %v774
    %v782 = vadd.f32 %v780, %v776
    %v783 = vmax.f32 %v781, 0.0
    %v784 = vmax.f32 %v782, 0.0
    %v785 = vpack.c.bf16 %v784, %v783
    %v786 = vpack.c.bf16 %v763, %v762
    %787 = vmatpush.bf16.msra.mxu0 %v497
    %788 = vmatpush.bf16.msra.mxu0 %v496
    %789 = vmatpush.bf16.msra.mxu0 %v495
    %790 = vmatpush.bf16.msra.mxu0 %v494
    %791 = vmatpush.bf16.msra.mxu0 %v493
    %792 = vmatpush.bf16.msra.mxu0 %v492
    %793 = vmatpush.bf16.msra.mxu0 %v491
    %794 = vmatpush.bf16.msra.mxu0 %v490
    %795 = vmatmul.bf16.gmra.mxu0 %v785
    %v796 = vpop.f32.mrf.mxu0
    %v797 = vadd.f32 %v354, %v796
    %v798 = vpop.f32.mrf.mxu0
    %v799 = vadd.f32 %v354, %v798
    %800 = vdwg.mxu0
    %801 = vmatpush.bf16.msra.mxu0 %v505
    %802 = vmatpush.bf16.msra.mxu0 %v504
    %803 = vmatpush.bf16.msra.mxu0 %v503
    %804 = vmatpush.bf16.msra.mxu0 %v502
    %805 = vmatpush.bf16.msra.mxu0 %v501
    %806 = vmatpush.bf16.msra.mxu0 %v500
    %807 = vmatpush.bf16.msra.mxu0 %v499
    %808 = vmatpush.bf16.msra.mxu0 %v498
    %809 = vmatmul.bf16.gmra.mxu0 %v786
    %v810 = vpop.f32.mrf.mxu0
    %v811 = vadd.f32 %v797, %v810
    %v812 = vpop.f32.mrf.mxu0
    %v813 = vadd.f32 %v799, %v812
    %814 = vdwg.mxu0
    %v815 = vmax.f32 %v811, 0.0
    %v816 = vmax.f32 %v813, 0.0
    %817 = vmatpush.bf16.msra.mxu0 %v395
    %818 = vmatpush.bf16.msra.mxu0 %v394
    %819 = vmatpush.bf16.msra.mxu0 %v393
    %820 = vmatpush.bf16.msra.mxu0 %v392
    %821 = vmatpush.bf16.msra.mxu0 %v391
    %822 = vmatpush.bf16.msra.mxu0 %v390
    %823 = vmatpush.bf16.msra.mxu0 %v389
    %824 = vmatpush.bf16.msra.mxu0 %v388
    %825 = vmatmul.bf16.gmra.mxu0 %v785
    %v826 = vpop.f32.mrf.mxu0
    %v827 = vadd.f32 0.0, %v826
    %v828 = vpop.f32.mrf.mxu0
    %v829 = vadd.f32 0.0, %v828
    %830 = vdwg.mxu0
    %s831 = scalar_lea.vmem [#allocation2], 96
    %v832 = vld [vmem:[%s831] sm:$0xff]
    %v833 = vld [vmem:[%s831 + $0x8] sm:$0xff]
    %v834 = vadd.f32 %v832, %v827
    %v835 = vadd.f32 %v833, %v829
    %v836 = vmax.f32 %v834, 0.0
    %v837 = vmax.f32 %v835, 0.0
    %v838 = vpack.c.bf16 %v837, %v836
    %v839 = vpack.c.bf16 %v816, %v815
    %840 = vmatpush.bf16.msra.mxu0 %v497
    %841 = vmatpush.bf16.msra.mxu0 %v496
    %842 = vmatpush.bf16.msra.mxu0 %v495
    %843 = vmatpush.bf16.msra.mxu0 %v494
    %844 = vmatpush.bf16.msra.mxu0 %v493
    %845 = vmatpush.bf16.msra.mxu0 %v492
    %846 = vmatpush.bf16.msra.mxu0 %v491
    %847 = vmatpush.bf16.msra.mxu0 %v490
    %848 = vmatmul.bf16.gmra.mxu0 %v838
    %v849 = vpop.f32.mrf.mxu0
    %v850 = vadd.f32 %v354, %v849
    %v851 = vpop.f32.mrf.mxu0
    %v852 = vadd.f32 %v354, %v851
    %853 = vdwg.mxu0
    %854 = vmatpush.bf16.msra.mxu0 %v505
    %855 = vmatpush.bf16.msra.mxu0 %v504
    %856 = vmatpush.bf16.msra.mxu0 %v503
    %857 = vmatpush.bf16.msra.mxu0 %v502
    %858 = vmatpush.bf16.msra.mxu0 %v501
    %859 = vmatpush.bf16.msra.mxu0 %v500
    %860 = vmatpush.bf16.msra.mxu0 %v499
    %861 = vmatpush.bf16.msra.mxu0 %v498
    %862 = vmatmul.bf16.gmra.mxu0 %v839
    %v863 = vpop.f32.mrf.mxu0
    %v864 = vadd.f32 %v850, %v863
    %v865 = vpop.f32.mrf.mxu0
    %v866 = vadd.f32 %v852, %v865
    %867 = vdwg.mxu0
    %v868 = vmax.f32 %v864, 0.0
    %v869 = vmax.f32 %v866, 0.0
    %870 = vmatpush.bf16.msra.mxu0 %v395
    %871 = vmatpush.bf16.msra.mxu0 %v394
    %872 = vmatpush.bf16.msra.mxu0 %v393
    %873 = vmatpush.bf16.msra.mxu0 %v392
    %874 = vmatpush.bf16.msra.mxu0 %v391
    %875 = vmatpush.bf16.msra.mxu0 %v390
    %876 = vmatpush.bf16.msra.mxu0 %v389
    %877 = vmatpush.bf16.msra.mxu0 %v388
    %878 = vmatmul.bf16.gmra.mxu0 %v838
    %v879 = vpop.f32.mrf.mxu0
    %v880 = vadd.f32 0.0, %v879
    %v881 = vpop.f32.mrf.mxu0
    %v882 = vadd.f32 0.0, %v881
    %883 = vdwg.mxu0
    %s884 = scalar_lea.vmem [#allocation2], 112
    %v885 = vld [vmem:[%s884] sm:$0xff]
    %v886 = vld [vmem:[%s884 + $0x8] sm:$0xff]
    %v887 = vadd.f32 %v885, %v880
    %v888 = vadd.f32 %v886, %v882
    %v889 = vmax.f32 %v887, 0.0
    %v890 = vmax.f32 %v888, 0.0
    %v891 = vpack.c.bf16 %v890, %v889
    %v892 = vpack.c.bf16 %v869, %v868
    %893 = vmatpush.bf16.msra.mxu0 %v497
    %894 = vmatpush.bf16.msra.mxu0 %v496
    %895 = vmatpush.bf16.msra.mxu0 %v495
    %896 = vmatpush.bf16.msra.mxu0 %v494
    %897 = vmatpush.bf16.msra.mxu0 %v493
    %898 = vmatpush.bf16.msra.mxu0 %v492
    %899 = vmatpush.bf16.msra.mxu0 %v491
    %900 = vmatpush.bf16.msra.mxu0 %v490
    %901 = vmatmul.bf16.gmra.mxu0 %v891
    %v902 = vpop.f32.mrf.mxu0
    %v903 = vadd.f32 %v354, %v902
    %v904 = vpop.f32.mrf.mxu0
    %v905 = vadd.f32 %v354, %v904
    %906 = vdwg.mxu0
    %907 = vmatpush.bf16.msra.mxu0 %v505
    %908 = vmatpush.bf16.msra.mxu0 %v504
    %909 = vmatpush.bf16.msra.mxu0 %v503
    %910 = vmatpush.bf16.msra.mxu0 %v502
    %911 = vmatpush.bf16.msra.mxu0 %v501
    %912 = vmatpush.bf16.msra.mxu0 %v500
    %913 = vmatpush.bf16.msra.mxu0 %v499
    %914 = vmatpush.bf16.msra.mxu0 %v498
    %915 = vmatmul.bf16.gmra.mxu0 %v892
    %v916 = vpop.f32.mrf.mxu0
    %v917 = vadd.f32 %v903, %v916
    %v918 = vpop.f32.mrf.mxu0
    %v919 = vadd.f32 %v905, %v918
    %920 = vdwg.mxu0
    %v921 = vmax.f32 %v917, 0.0
    %v922 = vmax.f32 %v919, 0.0
    %v923 = vpack.c.bf16 %v922, %v921
    %v924 = vld [vmem:[#allocation11] sm:$0xf]
    %v925 = vld [vmem:[#allocation11 + $0x4] sm:$0xf]
    %v926 = vld [vmem:[#allocation11 + $0x8] sm:$0xf]
    %v927 = vld [vmem:[#allocation11 + $0xc] sm:$0xf]
    %v928 = vld [vmem:[#allocation11 + $0x10] sm:$0xf]
    %v929 = vld [vmem:[#allocation11 + $0x14] sm:$0xf]
    %v930 = vld [vmem:[#allocation11 + $0x18] sm:$0xf]
    %v931 = vld [vmem:[#allocation11 + $0x1c] sm:$0xf]
    %v932 = vld [vmem:[#allocation11 + $0x20] sm:$0xf]
    %v933 = vld [vmem:[#allocation11 + $0x24] sm:$0xf]
    %v934 = vld [vmem:[#allocation11 + $0x28] sm:$0xf]
    %v935 = vld [vmem:[#allocation11 + $0x2c] sm:$0xf]
    %v936 = vld [vmem:[#allocation11 + $0x30] sm:$0xf]
    %v937 = vld [vmem:[#allocation11 + $0x34] sm:$0xf]
    %v938 = vld [vmem:[#allocation11 + $0x38] sm:$0xf]
    %v939 = vld [vmem:[#allocation11 + $0x3c] sm:$0xf]
    %v940 = vld [vmem:[%s6] sm:$0x1]
    %v942 = vperm.slane %v940, 0
    %v960 = vunpack.c.l.b16 %v924
    %v961 = vunpack.c.l.b16 %v925
    %v962 = vunpack.c.l.b16 %v926
    %v963 = vunpack.c.l.b16 %v927
    %v964 = vunpack.c.l.b16 %v928
    %v965 = vunpack.c.l.b16 %v929
    %v966 = vunpack.c.l.b16 %v930
    %v967 = vunpack.c.l.b16 %v931
    %v968 = vunpack.c.l.b16 %v932
    %v969 = vunpack.c.l.b16 %v933
    %v970 = vunpack.c.l.b16 %v934
    %v971 = vunpack.c.l.b16 %v935
    %v972 = vunpack.c.l.b16 %v936
    %v973 = vunpack.c.l.b16 %v937
    %v974 = vunpack.c.l.b16 %v938
    %v975 = vunpack.c.l.b16 %v939
    %v976 = vpack.c.b16 %v961, %v960
    %v977 = vpack.c.b16 %v963, %v962
    %v978 = vpack.c.b16 %v965, %v964
    %v979 = vpack.c.b16 %v967, %v966
    %v980 = vpack.c.b16 %v969, %v968
    %v981 = vpack.c.b16 %v971, %v970
    %v982 = vpack.c.b16 %v973, %v972
    %v983 = vpack.c.b16 %v975, %v974
    %992 = vmatpush.bf16.msra.mxu0 %v983
    %993 = vmatpush.bf16.msra.mxu0 %v982
    %994 = vmatpush.bf16.msra.mxu0 %v981
    %995 = vmatpush.bf16.msra.mxu0 %v980
    %996 = vmatpush.bf16.msra.mxu0 %v979
    %997 = vmatpush.bf16.msra.mxu0 %v978
    %998 = vmatpush.bf16.msra.mxu0 %v977
    %999 = vmatpush.bf16.msra.mxu0 %v976
    %1000 = vmatmul.bf16.gmra.mxu0 %v923
    %v1001 = vpop.f32.mrf.mxu0
    %v1002 = vadd.f32 %v942, %v1001
    %v1003 = vpop.f32.mrf.mxu0
    %v1004 = vadd.f32 %v942, %v1003
    %1005 = vdwg.mxu0
    %1006 = vst [vmem:[#allocation12] sm:$0xff] %v1002
    %1007 = vst [vmem:[#allocation12 + $0x8] sm:$0xff] %v1004
    // Predicated region
    $region50: #{tpu_custom_call.1} parent=1 // pred_check
      _
    $region51: #{tpu_custom_call.1} parent=1 // pred_check_branch
      %1009 = sbr.rel (0) target = $region53
    $region52: #{tpu_custom_call.1} parent=1 // pred_region
      %1011 = vsyncadd [#allocation5], 0
      %s1012 = sshll.u32 [#allocation12], 4
      %s1013 = int_to_ptr.vmem [resolvable:$true] %s1012
      %s1014 = sshll.u32 %s7, 4
      %s1015 = int_to_ptr.hbm [resolvable:$true] %s1014
      %1020 = dma.vmem_to_hbm [thread:$0]  %s1013, 256, %s1015, [#allocation5], 128, 128, 8
    $region53: #{tpu_custom_call.1} parent=1 // pred_fallthru
      _
    // Predicated region
    $region54: #{tpu_custom_call.1} parent=1 // pred_check
      _
    $region55: #{tpu_custom_call.1} parent=1 // pred_check_branch
      %1022 = sbr.rel (0) target = $region57
    $region56: #{tpu_custom_call.1} parent=1 // pred_region
      %1024 = dma.done [#allocation5], 256
    $region57: #{tpu_custom_call.1} parent=1 // pred_fallthru
      _
    %1025 = vsyncpa [#allocation4], 1
    %1026 = vsyncpa [#allocation7], 1
    %1027 = vsyncpa [#allocation10], 1
    %1028 = vsyncpa [#allocation5], 1

</llo_original>
